<compile_context>
chip_gen: v6e
topology: v6e:2x2x1
jax: 0.10.0
libtpu: 0.0.40
codegen_flags: <defaults>
</compile_context>

<pallas_src>
import math
from typing import NamedTuple, Optional

import jax
import jax.numpy as jnp
from jax.experimental import pallas as pl
from jax.experimental.pallas import tpu as pltpu


# ----------------------------------------------------------------------------
# Kernels: y = x @ W + b with W already in [K, N] layout (transposed once at
# parameter-prep time), f32 accumulation, single bias add on the last K step.
# ----------------------------------------------------------------------------

def _linear_kernel_f32(x_ref, w_ref, b_ref, o_ref):
    """f32 output: accumulate straight into the resident output tile
    (drops the separate tm x tn f32 VMEM accumulator)."""
    k = pl.program_id(2)

    @pl.when(k == 0)
    def _():
        o_ref[...] = jnp.zeros_like(o_ref)

    o_ref[...] += jnp.dot(x_ref[...], w_ref[...],
                          preferred_element_type=jnp.float32)

    @pl.when(k == pl.num_programs(2) - 1)
    def _():
        o_ref[...] += b_ref[...]


def _linear_kernel_acc(x_ref, w_ref, b_ref, o_ref, acc_ref):
    """Generic output dtype: f32 VMEM accumulator, one cast on the last K step."""
    k = pl.program_id(2)

    @pl.when(k == 0)
    def _():
        acc_ref[...] = jnp.zeros_like(acc_ref)

    acc_ref[...] += jnp.dot(x_ref[...], w_ref[...],
                            preferred_element_type=jnp.float32)

    @pl.when(k == pl.num_programs(2) - 1)
    def _():
        o_ref[...] = (acc_ref[...] + b_ref[...]).astype(o_ref.dtype)


# ----------------------------------------------------------------------------
# Tiling / hardware helpers
# ----------------------------------------------------------------------------

def _round_up(v, m):
    return ((v + m - 1) // m) * m


def _sublane_for(dtype):
    # 8 rows for f32, 16 for bf16, 32 for int8/fp8 (dense vreg packing).
    return max(8, 32 // jnp.dtype(dtype).itemsize)


def _balanced_tile(dim, max_tile, gran):
    """Largest gran-multiple tile <= max_tile that splits round_up(dim, gran)
    into (nearly) equal blocks, bounding padding waste to well under a tile."""
    dim_r = _round_up(max(dim, 1), gran)
    if dim_r <= max_tile:
        return dim_r
    n_blocks = -(-dim_r // max_tile)
    return _round_up(-(-dim_r // n_blocks), gran)


def _pick_tile(dim, max_tile, grans):
    """Pick the tile minimizing the padded extent; prefer MXU-shaped
    (larger-granularity) tiles on ties."""
    best_tile, best_key = None, None
    for g in grans:
        cap = (max_tile // g) * g
        if cap == 0:
            continue
        t = _balanced_tile(dim, cap, g)
        key = (_round_up(dim, t), -g)
        if best_key is None or key < best_key:
            best_tile, best_key = t, key
    return best_tile


def _hw_config():
    """Generation-gated tile caps and explicit scoped-VMEM limits."""
    try:
        kind = jax.devices()[0].device_kind.lower()
    except Exception:  # pragma: no cover
        kind = ""
    mib = 1024 * 1024
    if "v7" in kind:
        # v7x: only 64 MiB physical VMEM per TensorCore -> modest tiles.
        return dict(gen="v7x", tm_max=256, tn_max=256, tk_max=1024,
                    mxu_gran=256, vmem_limit_bytes=48 * mib)
    if "v6" in kind:
        return dict(gen="v6e", tm_max=512, tn_max=512, tk_max=1024,
                    mxu_gran=256, vmem_limit_bytes=64 * mib)
    if "v5" in kind:
        return dict(gen="v5e", tm_max=512, tn_max=512, tk_max=1024,
                    mxu_gran=128, vmem_limit_bytes=64 * mib)
    return dict(gen="unknown", tm_max=256, tn_max=256, tk_max=1024,
                mxu_gran=128, vmem_limit_bytes=48 * mib)


def _maybe_buffered_spec(block_shape, index_map, *, extra_buffering):
    """Weight BlockSpec; on v5e skinny-M (weight-streaming) request a third
    pipeline buffer so the next weight tile's DMA is never exposed."""
    if extra_buffering:
        try:
            return pl.BlockSpec(block_shape, index_map,
                                pipeline_mode=pl.Buffered(3))
        except TypeError:  # API variant without pipeline_mode: fall back
            pass
    return pl.BlockSpec(block_shape, index_map)


# ----------------------------------------------------------------------------
# Parameter prep (one-time, init-time) + forward
# ----------------------------------------------------------------------------

class VectorDotMeta(NamedTuple):
    out_dim: int
    in_dim: int
    n_pad: int
    k_pad: int
    tn: int
    tk: int
    tm_max: int
    mxu_gran: int
    vmem_limit_bytes: int
    gen: str


def prepare_vector_dot_params(weight, bias,
                              *, compute_dtype: Optional[jnp.dtype] = None):
    """One-time parameter preparation (keep OUT of the per-call jit path):
      * transpose the PyTorch [out_dim, in_dim] weight to [in_dim, out_dim]
        so the kernel uses a plain MXU (1,)x(0,) contraction,
      * zero-pad it once to lane-dense tile multiples (per-call weight padding
        would double weight HBM traffic),
      * optionally cast it once to a faster compute dtype (bf16 on v6e/v7x);
        the bias stays f32 so the epilogue add stays f32."""
    cfg = _hw_config()
    out_dim, in_dim = weight.shape
    if compute_dtype is not None:
        weight = weight.astype(compute_dtype)

    n_grans = (128,) if cfg["mxu_gran"] <= 128 else (128, cfg["mxu_gran"])
    tn = _pick_tile(out_dim, cfg["tn_max"], n_grans)
    tk = _pick_tile(in_dim, cfg["tk_max"], (128,))
    n_pad = _round_up(out_dim, tn)
    k_pad = _round_up(in_dim, tk)

    w_t = weight.T  # [in_dim, out_dim]
    if (k_pad, n_pad) != (in_dim, out_dim):
        w_t = jnp.pad(w_t, ((0, k_pad - in_dim), (0, n_pad - out_dim)))
    b_p = bias.reshape(1, out_dim).astype(jnp.float32)
    if n_pad != out_dim:
        b_p = jnp.pad(b_p, ((0, 0), (0, n_pad - out_dim)))

    meta = VectorDotMeta(out_dim=out_dim, in_dim=in_dim, n_pad=n_pad,
                         k_pad=k_pad, tn=tn, tk=tk, tm_max=cfg["tm_max"],
                         mxu_gran=cfg["mxu_gran"],
                         vmem_limit_bytes=cfg["vmem_limit_bytes"],
                         gen=cfg["gen"])
    return jnp.asarray(w_t), jnp.asarray(b_p), meta


def vector_dot_forward(x, w_p, b_p, *, meta: VectorDotMeta):
    """y = x @ weight.T + bias (PyTorch nn.Linear semantics).  `w_p`, `b_p`,
    `meta` come from prepare_vector_dot_params. x may have any leading dims."""
    out_dtype = x.dtype
    lead = x.shape[:-1]
    assert x.shape[-1] == meta.in_dim
    m = math.prod(lead) if lead else 1

    compute_dtype = w_p.dtype
    sublane = _sublane_for(compute_dtype)

    # Balanced, waste-minimizing M tile (N/K tiles were fixed at prep time).
    m_grans = (sublane,) if meta.mxu_gran <= sublane else (sublane, meta.mxu_gran)
    tm = _pick_tile(m, meta.tm_max, m_grans)

    # v7x: make sure >=2 blocks exist along a "parallel" axis so both
    # TensorCores get work (prefer splitting M).
    if meta.gen == "v7x" and meta.n_pad // meta.tn < 2:
        m_r = _round_up(m, sublane)
        if _round_up(m_r, tm) // tm < 2 and m_r >= 2 * sublane:
            tm = _round_up(-(-m_r // 2), sublane)

    m_pad = _round_up(m, tm)

    # Only the (small, per-call) activation is padded: K padding is
    # mathematically inert for the contraction, padded M rows are sliced away.
    x2d = x.reshape(m, meta.in_dim)
    if x2d.dtype != compute_dtype:
        x2d = x2d.astype(compute_dtype)
    if (m_pad, meta.k_pad) != (m, meta.in_dim):
        x2d = jnp.pad(x2d, ((0, m_pad - m), (0, meta.k_pad - meta.in_dim)))

    grid = (m_pad // tm, meta.n_pad // meta.tn, meta.k_pad // meta.tk)
    gi, gj, gk = grid

    # Honest advisory cost: padded FLOPs plus actual re-streaming traffic.
    flops = 2 * m_pad * meta.k_pad * meta.n_pad
    bytes_accessed = int(
        gj * x2d.size * x2d.dtype.itemsize            # x refetched per N block
        + gi * w_p.size * w_p.dtype.itemsize          # W refetched per M block
        + b_p.size * b_p.dtype.itemsize
        + m_pad * meta.n_pad * jnp.dtype(out_dtype).itemsize)

    x_spec = pl.BlockSpec((tm, meta.tk), lambda i, j, k: (i, k))
    w_spec = _maybe_buffered_spec(
        (meta.tk, meta.tn), lambda i, j, k: (k, j),
        extra_buffering=(meta.gen == "v5e" and m <= 256 and gk > 1))
    b_spec = pl.BlockSpec((1, meta.tn), lambda i, j, k: (0, j))
    o_spec = pl.BlockSpec((tm, meta.tn), lambda i, j, k: (i, j))

    if jnp.dtype(out_dtype) == jnp.dtype(jnp.float32):
        kernel = _linear_kernel_f32
        scratch = []
    else:
        kernel = _linear_kernel_acc
        scratch = [pltpu.VMEM((tm, meta.tn), jnp.float32)]

    out2d = pl.pallas_call(
        kernel,
        out_shape=jax.ShapeDtypeStruct((m_pad, meta.n_pad), out_dtype),
        grid=grid,
        in_specs=[x_spec, w_spec, b_spec],
        out_specs=o_spec,
        scratch_shapes=scratch,
        compiler_params=pltpu.CompilerParams(
            dimension_semantics=("parallel", "parallel", "arbitrary"),
            vmem_limit_bytes=meta.vmem_limit_bytes,
        ),
        cost_estimate=pl.CostEstimate(
            flops=flops, transcendentals=0, bytes_accessed=bytes_accessed),
    )(x2d, w_p, b_p)

    out2d = out2d[:m, :meta.out_dim]
    return out2d.reshape(*lead, meta.out_dim)


if __name__ == "__main__":
    # Small shapes consistent with the module's forward.
    batch, seq, input_dim, output_dim = 2, 8, 32, 64

    key = jax.random.PRNGKey(0)
    kx, kw, kb = jax.random.split(key, 3)

    x = jax.random.normal(kx, (batch, seq, input_dim), dtype=jnp.float32)
    # Deterministic synthetic parameters (PyTorch nn.Linear shapes/init range).
    bound = 1.0 / (input_dim ** 0.5)
    weight = jax.random.uniform(
        kw, (output_dim, input_dim), minval=-bound, maxval=bound,
        dtype=jnp.float32)
    bias = jax.random.uniform(
        kb, (output_dim,), minval=-bound, maxval=bound, dtype=jnp.float32)

    # One-time init-time prep (pad / transpose / optional bf16 cast of weight).
    # Pass compute_dtype=jnp.bfloat16 here for the fast MXU path on v6e/v7x.
    w_p, b_p, meta = prepare_vector_dot_params(weight, bias, compute_dtype=None)

    fwd = jax.jit(vector_dot_forward, static_argnames=("meta",))
    y = fwd(x, w_p, b_p, meta=meta)
    jax.block_until_ready(y)

    # Cross-check against plain JAX reference.
    y_ref = x @ weight.T + bias
    assert y.shape == (batch, seq, output_dim)
    assert jnp.allclose(y, y_ref, atol=1e-5, rtol=1e-5)

    print("KERNEL_OK")
</pallas_src>

<mosaic_0001>
module attributes {stable_mosaic.version = 11 : i64} {
  func.func @_linear_kernel_f32(%arg0: i32, %arg1: i32, %arg2: i32, %arg3: memref<16x128xf32, #tpu.memory_space<vmem>>, %arg4: memref<128x128xf32, #tpu.memory_space<vmem>>, %arg5: memref<1x128xf32, #tpu.memory_space<vmem>>, %arg6: memref<16x128xf32, #tpu.memory_space<vmem>>) attributes {dimension_semantics = [#tpu.dimension_semantics<parallel>, #tpu.dimension_semantics<parallel>, #tpu.dimension_semantics<arbitrary>], iteration_bounds = array<i64: 1, 1, 1>, scalar_prefetch = 0 : i64, scratch_operands = 0 : i64, tpu.core_type = #tpu.core_type<tc>, window_params = [{transform_indices = @transform_0, window_bounds = array<i64: 16, 128>}, {transform_indices = @transform_1, window_bounds = array<i64: 128, 128>}, {transform_indices = @transform_2, window_bounds = array<i64: 1, 128>}, {transform_indices = @transform_3, window_bounds = array<i64: 16, 128>}]} {
    %c0_i32 = arith.constant 0 : i32
    %0 = arith.cmpi eq, %arg2, %c0_i32 : i32
    %1 = arith.extui %0 : i1 to i32
    %c0_i32_0 = arith.constant 0 : i32
    %2 = arith.cmpi ne, %1, %c0_i32_0 : i32
    scf.if %2 {
      %cst_10 = arith.constant 0.000000e+00 : f32
      %12 = vector.broadcast %cst_10 : f32 to vector<16x128xf32>
      %c0_11 = arith.constant 0 : index
      %c0_12 = arith.constant 0 : index
      %13 = vector.load %arg6[%c0_11, %c0_12] : memref<16x128xf32, #tpu.memory_space<vmem>>, vector<16x128xf32>
      tpu.vector_store %arg6[%c0_11, %c0_12], %12 {strides = array<i32>} : memref<16x128xf32, #tpu.memory_space<vmem>>, vector<16x128xf32>,
    } else {
    }
    %c0 = arith.constant 0 : index
    %c0_1 = arith.constant 0 : index
    %3 = vector.load %arg6[%c0, %c0_1] : memref<16x128xf32, #tpu.memory_space<vmem>>, vector<16x128xf32>
    %c0_2 = arith.constant 0 : index
    %c0_3 = arith.constant 0 : index
    %4 = vector.load %arg3[%c0_2, %c0_3] : memref<16x128xf32, #tpu.memory_space<vmem>>, vector<16x128xf32>
    %c0_4 = arith.constant 0 : index
    %c0_5 = arith.constant 0 : index
    %5 = vector.load %arg4[%c0_4, %c0_5] : memref<128x128xf32, #tpu.memory_space<vmem>>, vector<128x128xf32>
    %cst = arith.constant dense<0.000000e+00> : vector<16x128xf32>
    %6 = tpu.matmul %4, %5, %cst {dimension_numbers = #tpu.dot_dimension_numbers<[1], [0], [0], [1], [0, 0, 1, 1], [], []>} : vector<16x128xf32>, vector<128x128xf32>, vector<16x128xf32> -> vector<16x128xf32>
    %7 = arith.addf %3, %6 : vector<16x128xf32>
    %c0_6 = arith.constant 0 : index
    %c0_7 = arith.constant 0 : index
    %8 = vector.load %arg6[%c0_6, %c0_7] : memref<16x128xf32, #tpu.memory_space<vmem>>, vector<16x128xf32>
    tpu.vector_store %arg6[%c0_6, %c0_7], %7 {strides = array<i32>} : memref<16x128xf32, #tpu.memory_space<vmem>>, vector<16x128xf32>,
    %c0_i32_8 = arith.constant 0 : i32
    %9 = arith.cmpi eq, %arg2, %c0_i32_8 : i32
    %10 = arith.extui %9 : i1 to i32
    %c0_i32_9 = arith.constant 0 : i32
    %11 = arith.cmpi ne, %10, %c0_i32_9 : i32
    scf.if %11 {
      %c0_10 = arith.constant 0 : index
      %c0_11 = arith.constant 0 : index
      %12 = vector.load %arg6[%c0_10, %c0_11] : memref<16x128xf32, #tpu.memory_space<vmem>>, vector<16x128xf32>
      %c0_12 = arith.constant 0 : index
      %c0_13 = arith.constant 0 : index
      %13 = vector.load %arg5[%c0_12, %c0_13] : memref<1x128xf32, #tpu.memory_space<vmem>>, vector<1x128xf32>
      %14 = vector.broadcast %13 : vector<1x128xf32> to vector<16x128xf32>
      %15 = arith.addf %12, %14 : vector<16x128xf32>
      %c0_14 = arith.constant 0 : index
      %c0_15 = arith.constant 0 : index
      %16 = vector.load %arg6[%c0_14, %c0_15] : memref<16x128xf32, #tpu.memory_space<vmem>>, vector<16x128xf32>
      tpu.vector_store %arg6[%c0_14, %c0_15], %15 {strides = array<i32>} : memref<16x128xf32, #tpu.memory_space<vmem>>, vector<16x128xf32>,
    } else {
    }
    return
  }
  func.func @transform_0(%arg0: i32, %arg1: i32, %arg2: i32) -> (i32, i32) {
    %c0_i32 = arith.constant 0 : i32
    return %arg0, %arg2 : i32, i32
  }
  func.func @transform_1(%arg0: i32, %arg1: i32, %arg2: i32) -> (i32, i32) {
    %c0_i32 = arith.constant 0 : i32
    return %arg2, %arg1 : i32, i32
  }
  func.func @transform_2(%arg0: i32, %arg1: i32, %arg2: i32) -> (i32, i32) {
    %c0_i32 = arith.constant 0 : i32
    %c0_i32_0 = arith.constant 0 : i32
    return %c0_i32, %arg1 : i32, i32
  }
  func.func @transform_3(%arg0: i32, %arg1: i32, %arg2: i32) -> (i32, i32) {
    %c0_i32 = arith.constant 0 : i32
    return %arg0, %arg1 : i32, i32
  }
}

</mosaic_0001>

<llo_original>
// kernel: vector_dot_forward.1
$region0: #{vector_dot_forward.1}
  #allocation0 [shape = 'u32[]', space=smem, size = 0x4, offset = 0x4, fixed_abs, tag = 'smem constant byte address 0x4 - core index']
  #allocation1 [shape = 'u32[144,128]{1,0:T(1,128)}', space=vmem, size = 0x12000, scoped, tag = 'internal scratch']
  %s0 = inlined_call_operand.vmem [shape: f32[16,128], index: 0, kind: input, shape index: {}]
  %s1 = inlined_call_operand.hbm [shape: f32[128,128], index: 1, kind: input, shape index: {}]
  %s2 = inlined_call_operand.vmem [shape: f32[1,128], index: 2, kind: input, shape index: {}]
  %s3 = inlined_call_operand.vmem [shape: f32[16,128], index: 3, kind: output, shape index: {}]
  %s4 = sld [smem:[#allocation0]]
  $region34: #{vector_dot_forward.1} parent=0
    _
  %s6 = ssub.s32 1, %s4
  %s7 = scalar_select 0, %s6, %s4
  $region1: #{vector_dot_forward.1} parent=0
    #allocation2 [shape = 'u8[65536]{0}', space=vmem, size = 0x10000, scoped, tag = 'input window, operand 1, single buffered']
    #allocation3 [shape = 's32[1]{0}', space=sflag, size = 0x4, scoped, tag = 'scoped memory for vector_dot_forward.1']
    %8 = vsyncpa [#allocation3], 0
    // Predicated region
    $region2: #{vector_dot_forward.1} parent=1 // pred_check
      _
    $region3: #{vector_dot_forward.1} parent=1 // pred_check_branch
      %10 = sbr.rel (0) target = $region5
    $region4: #{vector_dot_forward.1} parent=1 // pred_region
      _
    $region5: #{vector_dot_forward.1} parent=1 // pred_fallthru
      _
    // Predicated region
    $region6: #{vector_dot_forward.1} parent=1 // pred_check
      _
    $region7: #{vector_dot_forward.1} parent=1 // pred_check_branch
      %12 = sbr.rel (0) target = $region9
    $region8: #{vector_dot_forward.1} parent=1 // pred_region
      %s14 = ssub.s32 2048, 2048
      %15 = vsyncadd [#allocation3], %s14
      %s16 = sshll.u32 [#allocation2], 4
      %s17 = int_to_ptr.vmem [resolvable:$true] %s16
      %22 = dma.hbm_to_vmem [thread:$0]  %s1, 2048, %s17, [#allocation3], 128, 128, 8
    $region9: #{vector_dot_forward.1} parent=1 // pred_fallthru
      _
    // Predicated region
    $region10: #{vector_dot_forward.1} parent=1 // pred_check
      _
    $region11: #{vector_dot_forward.1} parent=1 // pred_check_branch
      %24 = sbr.rel (0) target = $region13
    $region12: #{vector_dot_forward.1} parent=1 // pred_region
      _
    $region13: #{vector_dot_forward.1} parent=1 // pred_fallthru
      _
    // Predicated region
    $region14: #{vector_dot_forward.1} parent=1 // pred_check
      _
    $region15: #{vector_dot_forward.1} parent=1 // pred_check_branch
      %26 = sbr.rel (0) target = $region17
    $region16: #{vector_dot_forward.1} parent=1 // pred_region
      %27 = dma.done [#allocation3], 2048
    $region17: #{vector_dot_forward.1} parent=1 // pred_fallthru
      _
    %p28 = scmp.eq.s32.totalorder 0, 0
    // Predicated region
    $region18: #{vector_dot_forward.1} parent=1 // pred_check
      %p29 = pneg %p28
    $region19: #{vector_dot_forward.1} parent=1 // pred_check_branch
      %31 = sbr.rel (%p29) target = $region21
    $region20: #{vector_dot_forward.1} parent=1 // pred_region
      %32 = vst [vmem:[%s3] sm:$0xff] 0.0
      %33 = vst [vmem:[%s3 + $0x8] sm:$0xff] 0.0
    $region21: #{vector_dot_forward.1} parent=1 // pred_fallthru
      _
    %v34 = vld [vmem:[%s3] sm:$0xff]
    %v35 = vld [vmem:[%s3 + $0x8] sm:$0xff]
    %v36 = vld [vmem:[%s0] sm:$0xff]
    %v37 = vld [vmem:[%s0 + $0x8] sm:$0xff]
    %v38 = vld [vmem:[#allocation2] sm:$0xff]
    %v39 = vld [vmem:[#allocation2 + $0x8] sm:$0xff]
    %v40 = vld [vmem:[#allocation2 + $0x10] sm:$0xff]
    %v41 = vld [vmem:[#allocation2 + $0x18] sm:$0xff]
    %v42 = vld [vmem:[#allocation2 + $0x20] sm:$0xff]
    %v43 = vld [vmem:[#allocation2 + $0x28] sm:$0xff]
    %v44 = vld [vmem:[#allocation2 + $0x30] sm:$0xff]
    %v45 = vld [vmem:[#allocation2 + $0x38] sm:$0xff]
    %v46 = vld [vmem:[#allocation2 + $0x40] sm:$0xff]
    %v47 = vld [vmem:[#allocation2 + $0x48] sm:$0xff]
    %v48 = vld [vmem:[#allocation2 + $0x50] sm:$0xff]
    %v49 = vld [vmem:[#allocation2 + $0x58] sm:$0xff]
    %v50 = vld [vmem:[#allocation2 + $0x60] sm:$0xff]
    %v51 = vld [vmem:[#allocation2 + $0x68] sm:$0xff]
    %v52 = vld [vmem:[#allocation2 + $0x70] sm:$0xff]
    %v53 = vld [vmem:[#allocation2 + $0x78] sm:$0xff]
    %54 = vmatprep.subr.mxu0 0.0
    %55 = vmatpush1.msra.mxu0 %v53
    %56 = vmatprep.subr.mxu0 0.0
    %57 = vmatpush1.msra.mxu0 %v52
    %58 = vmatprep.subr.mxu0 0.0
    %59 = vmatpush1.msra.mxu0 %v51
    %60 = vmatprep.subr.mxu0 0.0
    %61 = vmatpush1.msra.mxu0 %v50
    %62 = vmatprep.subr.mxu0 0.0
    %63 = vmatpush1.msra.mxu0 %v49
    %64 = vmatprep.subr.mxu0 0.0
    %65 = vmatpush1.msra.mxu0 %v48
    %66 = vmatprep.subr.mxu0 0.0
    %67 = vmatpush1.msra.mxu0 %v47
    %68 = vmatprep.subr.mxu0 0.0
    %69 = vmatpush1.msra.mxu0 %v46
    %70 = vmatprep.subr.mxu0 0.0
    %71 = vmatpush1.msra.mxu0 %v45
    %72 = vmatprep.subr.mxu0 0.0
    %73 = vmatpush1.msra.mxu0 %v44
    %74 = vmatprep.subr.mxu0 0.0
    %75 = vmatpush1.msra.mxu0 %v43
    %76 = vmatprep.subr.mxu0 0.0
    %77 = vmatpush1.msra.mxu0 %v42
    %78 = vmatprep.subr.mxu0 0.0
    %79 = vmatpush1.msra.mxu0 %v41
    %80 = vmatprep.subr.mxu0 0.0
    %81 = vmatpush1.msra.mxu0 %v40
    %82 = vmatprep.subr.mxu0 0.0
    %83 = vmatpush1.msra.mxu0 %v39
    %84 = vmatprep.subr.mxu0 0.0
    %85 = vmatpush1.msra.mxu0 %v38
    %86 = vmatprep.subr.mxu0 0.0
    %87 = vmatpush2.msra.mxu0 0.0
    %88 = vmatprep.subr.mxu0 0.0
    %89 = vmatpush2.msra.mxu0 0.0
    %90 = vmatprep.subr.mxu0 0.0
    %91 = vmatpush2.msra.mxu0 0.0
    %92 = vmatprep.subr.mxu0 0.0
    %93 = vmatpush2.msra.mxu0 0.0
    %94 = vmatprep.subr.mxu0 0.0
    %95 = vmatpush2.msra.mxu0 0.0
    %96 = vmatprep.subr.mxu0 0.0
    %97 = vmatpush2.msra.mxu0 0.0
    %98 = vmatprep.subr.mxu0 0.0
    %99 = vmatpush2.msra.mxu0 0.0
    %100 = vmatprep.subr.mxu0 0.0
    %101 = vmatpush2.msra.mxu0 0.0
    %102 = vmatprep.subr.mxu0 0.0
    %103 = vmatpush2.msra.mxu0 0.0
    %104 = vmatprep.subr.mxu0 0.0
    %105 = vmatpush2.msra.mxu0 0.0
    %106 = vmatprep.subr.mxu0 0.0
    %107 = vmatpush2.msra.mxu0 0.0
    %108 = vmatprep.subr.mxu0 0.0
    %109 = vmatpush2.msra.mxu0 0.0
    %110 = vmatprep.subr.mxu0 0.0
    %111 = vmatpush2.msra.mxu0 0.0
    %112 = vmatprep.subr.mxu0 0.0
    %113 = vmatpush2.msra.mxu0 0.0
    %114 = vmatprep.subr.mxu0 0.0
    %115 = vmatpush2.msra.mxu0 0.0
    %116 = vmatprep.subr.mxu0 0.0
    %117 = vmatpush2.msra.mxu0 0.0
    %118 = vmatprep.mubr.f32.mxu0 0.0
    %119 = vmatmul.mubr.f32.gmra.mxu0 %v36
    %v120 = vpop.f32.mrf.mxu0
    %v121 = vadd.f32 0.0, %v120
    %v122 = vpop.f32.mrf.mxu0
    %123 = vmatprep.mubr.f32.mxu0 0.0
    %124 = vmatmul.mubr.f32.gmra.mxu0 %v37
    %v125 = vpop.f32.mrf.mxu0
    %v126 = vadd.f32 0.0, %v125
    %v127 = vpop.f32.mrf.mxu0
    %128 = vdwg.mxu0
    %v129 = vadd.f32 %v34, %v121
    %v130 = vadd.f32 %v35, %v126
    %131 = vst [vmem:[%s3] sm:$0xff] %v129
    %132 = vst [vmem:[%s3 + $0x8] sm:$0xff] %v130
    // Predicated region
    $region22: #{vector_dot_forward.1} parent=1 // pred_check
      %p133 = pneg %p28
    $region23: #{vector_dot_forward.1} parent=1 // pred_check_branch
      %135 = sbr.rel (%p133) target = $region25
    $region24: #{vector_dot_forward.1} parent=1 // pred_region
      %v136 = vld [vmem:[%s3] sm:$0xff]
      %v137 = vld [vmem:[%s3 + $0x8] sm:$0xff]
      %v138 = vld [vmem:[%s2] sm:$0x1]
      %v140 = vlaneseq
      %v141 = vshrl.u32 %v140, 7
      %v142 = vsub.s32 0, %v141
      %v143 = vrot.slane %v138, %v142
      %v145 = vadd.f32 %v136, %v143
      %v146 = vadd.f32 %v137, %v143
      %147 = vst [vmem:[%s3] sm:$0xff] %v145
      %148 = vst [vmem:[%s3 + $0x8] sm:$0xff] %v146
    $region25: #{vector_dot_forward.1} parent=1 // pred_fallthru
      _
    // Predicated region
    $region26: #{vector_dot_forward.1} parent=1 // pred_check
      _
    $region27: #{vector_dot_forward.1} parent=1 // pred_check_branch
      %150 = sbr.rel (0) target = $region29
    $region28: #{vector_dot_forward.1} parent=1 // pred_region
      _
    $region29: #{vector_dot_forward.1} parent=1 // pred_fallthru
      _
    // Predicated region
    $region30: #{vector_dot_forward.1} parent=1 // pred_check
      _
    $region31: #{vector_dot_forward.1} parent=1 // pred_check_branch
      %152 = sbr.rel (0) target = $region33
    $region32: #{vector_dot_forward.1} parent=1 // pred_region
      _
    $region33: #{vector_dot_forward.1} parent=1 // pred_fallthru
      _
    %153 = vsyncpa [#allocation3], 1

</llo_original>
